<compile_context>
chip_gen: v5e
topology: v5e:2x2
jax: 0.10.0
libtpu: 0.0.40
codegen_flags: <defaults>
</compile_context>

<pallas_src>
import functools
import math

import jax
import jax.numpy as jnp
from jax import lax
from jax.experimental import pallas as pl
from jax.experimental.pallas import tpu as pltpu


def _mix32(v):
    """lowbias32-style finalizer: uint32 -> well-mixed uint32 (plain VPU int ops)."""
    v = (v ^ (v >> 16)) * jnp.uint32(0x7FEB352D)
    v = (v ^ (v >> 15)) * jnp.uint32(0x846CA68B)
    return v ^ (v >> 16)


def _vdrop_kernel(seed_ref, x_ref, o_ref, *, p, rescaling, hidden, fold):
    """Grid = (batch, seq_tiles). x_ref / o_ref are (TS, fold*H) blocks (batch squeezed).

    Mask is a pure function of (seed, batch, hidden index); independent of the
    sequence-tile index, so it is identical for every sequence position of a row.
    When fold > 1, `fold` sequence rows live along the lane axis and the per-h mask
    is made periodic with a bitwise AND (hidden is a power of two in that case).
    """
    width = hidden * fold
    b = pl.program_id(0).astype(jnp.uint32)
    seed = seed_ref[0].astype(jnp.uint32)

    h_idx = lax.broadcasted_iota(jnp.int32, (1, width), 1).astype(jnp.uint32)
    if fold > 1:
        h_idx = h_idx & jnp.uint32(hidden - 1)      # lane -> hidden index (H is a pow2)

    v = (h_idx * jnp.uint32(0x9E3779B1)
         + seed * jnp.uint32(0x85EBCA77)
         + b * jnp.uint32(0xC2B2AE3D))
    bits = _mix32(v)                                 # (1, width) uniform u32

    # bernoulli_(p): keep iff bits < p * 2^32; fold rescale + dtype cast into the select.
    threshold = jnp.uint32(min(int(p * 4294967296.0), 4294967295))
    scale = (1.0 / (1.0 - p)) if rescaling else 1.0
    mask = jnp.where(bits < threshold,
                     jnp.float32(scale), jnp.float32(0.0)).astype(x_ref.dtype)

    # Single multiply; (1, width) mask broadcasts across the TS sublane rows.
    # Lane-dense full-width output block -> unmasked vector stores.
    o_ref[...] = x_ref[...] * mask


def _vmem_capacity_bytes():
    """Physical VMEM of the local chip; conservative (v7x) fallback if unavailable."""
    try:
        info = pltpu.get_tpu_info()
        for name in ("vmem_capacity_bytes", "vmem_size_bytes", "vmem_bytes"):
            v = getattr(info, name, None)
            if v:
                return int(v)
    except Exception:
        pass
    return 64 << 20


def _sizing():
    """(target_block_bytes, vmem_limit_bytes) sized per TPU generation."""
    vmem_cap = _vmem_capacity_bytes()
    # Leave ~25% of physical VMEM for the compiler; never ask for more than 64 MiB.
    vmem_limit = min((vmem_cap * 3) // 4, 64 << 20)
    # in + out, each double-buffered => 4 live blocks; keep ~20% headroom.
    target_block = min(vmem_limit // 5, 12 << 20)
    return target_block, vmem_limit


def _fold_factor(S, H, lane=128):
    """Fold factor f so the stored last dim f*H is a multiple of 128 (lane-dense stores).

    Only folds when H is a power of two below 128 (so the in-kernel lane->h map is a
    bitwise AND) and S is divisible by f.  Otherwise returns 1 (still correct; the
    last dim then equals the full array dim, just with masked partial stores).
    """
    if H >= lane or H <= 0 or (H & (H - 1)) != 0:
        return 1
    f = lane // H
    return f if S % f == 0 else 1


def _pick_seq_tile(S, width, itemsize, target_block_bytes, min_seq_tiles=1):
    """Largest sequence tile (multiple of the native sublane packing) whose block is
    <= target_block_bytes, preferring a tile that divides S, and capped so there are
    at least `min_seq_tiles` tiles (megacore balance)."""
    sub = max(8, 32 // itemsize)                     # 8 f32, 16 bf16, 32 int8/fp8
    rows = max(sub, target_block_bytes // max(1, width * itemsize))
    rows = (rows // sub) * sub
    if min_seq_tiles > 1 and S > sub:
        cap = -(-S // min_seq_tiles)                 # ceil(S / min_seq_tiles)
        cap = -(-cap // sub) * sub                   # round up to sublane multiple
        rows = min(rows, max(sub, cap))
    if rows >= S:
        return S
    # Prefer a tile that divides S (no padded final block), never shrinking below half.
    lo = max(sub, ((rows // 2) // sub) * sub)
    for d in range(rows, lo - 1, -sub):
        if S % d == 0:
            return d
    return rows


def variational_dropout(x, seed, *, p=0.5, rescaling=True, training=True,
                        seq_tile=None, donate_input=False):
    """Forward pass of VariationalDropout (on_the_fly=True behaviour) on (B, S, H).

    donate_input=True aliases x to the output (saves one HBM allocation) — only use
    it when the caller no longer needs x.
    """
    # TODO(synk): on_the_fly=False / reset() stateful mask caching has no nn.Module
    # state here; emulate it by reusing the same `seed` across calls until "reset".
    if not training or p == 0.0:
        return x
    if p >= 1.0:
        if rescaling:
            raise ValueError("p >= 1.0 with rescaling divides by zero (as in the PyTorch module).")
        return x  # bernoulli_(1.0) keeps every element, no rescale -> identity

    B, S, H = x.shape
    fold = _fold_factor(S, H)
    S_w, W = S // fold, H * fold
    x_w = x if fold == 1 else x.reshape(B, S_w, W)    # free, row-major metadata reshape

    target_block, vmem_limit = _sizing()
    min_seq_tiles = 2 if B == 1 else 1                # keep both v7x TensorCores busy
    ts = seq_tile if seq_tile is not None else _pick_seq_tile(
        S_w, W, x.dtype.itemsize, target_block, min_seq_tiles)

    seed_arr = jnp.asarray([seed], dtype=jnp.int32)
    kernel = functools.partial(_vdrop_kernel, p=float(p), rescaling=rescaling,
                               hidden=H, fold=fold)

    out = pl.pallas_call(
        kernel,
        out_shape=jax.ShapeDtypeStruct((B, S_w, W), x.dtype),
        grid_spec=pltpu.PrefetchScalarGridSpec(
            num_scalar_prefetch=1,                    # seed lives in SMEM
            grid=(B, pl.cdiv(S_w, ts)),
            in_specs=[pl.BlockSpec((None, ts, W), lambda b, s, seed_ref: (b, s, 0))],
            out_specs=pl.BlockSpec((None, ts, W), lambda b, s, seed_ref: (b, s, 0)),
        ),
        compiler_params=pltpu.CompilerParams(
            dimension_semantics=("parallel", "parallel"),
            vmem_limit_bytes=vmem_limit),
        # Flat input index 1 is x (index 0 is the scalar-prefetched seed).
        input_output_aliases=({1: 0} if donate_input else {}),
    )(seed_arr, x_w)
    return out if fold == 1 else out.reshape(B, S, H)


if __name__ == "__main__":
    key = jax.random.PRNGKey(0)
    p = 0.5
    scale = 1.0 / (1.0 - p)

    # Small (batch, seq, hidden) matching the module defaults batch_dim=0, vector_dim=-1.
    B, S, H = 2, 8, 128
    x = jax.random.normal(key, (B, S, H), dtype=jnp.float32)

    out = jax.block_until_ready(variational_dropout(x, seed=0, p=p, rescaling=True, training=True))

    kept = jnp.abs(out) > 0.0                       # x ~ N(0,1): exact zeros not expected
    # every kept element equals x/(1-p), every dropped element equals 0
    assert bool(jnp.allclose(out, jnp.where(kept, x * scale, 0.0), atol=1e-5))
    # the keep-mask is shared across the sequence dimension (variational property)
    assert bool(jnp.all(kept == kept[:, :1, :]))
    # masks differ across batch rows, and the keep-rate is roughly p
    assert bool(jnp.any(kept[0, 0] != kept[1, 0]))
    rate = float(jnp.mean(kept[:, 0, :].astype(jnp.float32)))
    assert 0.2 < rate < 0.8
    # eval mode / p == 0 are identity
    assert bool(jnp.allclose(variational_dropout(x, seed=0, p=p, training=False), x))
    assert bool(jnp.allclose(variational_dropout(x, seed=0, p=0.0, training=True), x))

    # Multi-tile sequence path: force a small sequence tile and verify the mask is
    # still identical across all sequence positions (i.e. across S-tiles).
    x2 = jax.random.normal(jax.random.PRNGKey(1), (2, 32, 128), dtype=jnp.float32)
    out2 = jax.block_until_ready(
        variational_dropout(x2, seed=3, p=p, rescaling=True, training=True, seq_tile=8))
    kept2 = jnp.abs(out2) > 0.0
    assert bool(jnp.all(kept2 == kept2[:, :1, :]))
    assert bool(jnp.allclose(out2, jnp.where(kept2, x2 * scale, 0.0), atol=1e-5))

    # Lane-dense fold path: H=32 (< 128, power of two) is folded so the stored last
    # dim is 128; mask must still be fixed across the sequence (even across folds).
    x3 = jax.random.normal(jax.random.PRNGKey(2), (2, 32, 32), dtype=jnp.float32)
    out3 = jax.block_until_ready(variational_dropout(x3, seed=7, p=p, rescaling=True, training=True))
    kept3 = jnp.abs(out3) > 0.0
    assert bool(jnp.all(kept3 == kept3[:, :1, :]))
    assert bool(jnp.allclose(out3, jnp.where(kept3, x3 * scale, 0.0), atol=1e-5))

    # batch == 1: the sequence axis is split into >= 2 parallel tiles (v7x megacore).
    x4 = jax.random.normal(jax.random.PRNGKey(3), (1, 64, 128), dtype=jnp.float32)
    out4 = jax.block_until_ready(variational_dropout(x4, seed=11, p=p, rescaling=True, training=True))
    kept4 = jnp.abs(out4) > 0.0
    assert bool(jnp.all(kept4 == kept4[:, :1, :]))
    assert bool(jnp.allclose(out4, jnp.where(kept4, x4 * scale, 0.0), atol=1e-5))

    print("KERNEL_OK")
</pallas_src>

<mosaic_0001>
module attributes {stable_mosaic.version = 11 : i64} {
  func.func @_vdrop_kernel(%arg0: i32, %arg1: i32, %arg2: memref<1xi32, #tpu.memory_space<smem>>, %arg3: memref<1x8x128xf32, #tpu.memory_space<vmem>>, %arg4: memref<1x8x128xf32, #tpu.memory_space<vmem>>) attributes {dimension_semantics = [#tpu.dimension_semantics<parallel>, #tpu.dimension_semantics<parallel>], iteration_bounds = array<i64: 2, 1>, scalar_prefetch = 1 : i64, scratch_operands = 0 : i64, tpu.core_type = #tpu.core_type<tc>, window_params = [{transform_indices = @transform_0, window_bounds = array<i64: 1, 8, 128>}, {transform_indices = @transform_1, window_bounds = array<i64: 1, 8, 128>}]} {
    %c0 = arith.constant 0 : index
    %0 = memref.load %arg2[%c0] : memref<1xi32, #tpu.memory_space<smem>>
    %1 = tpu.iota {dimensions = array<i32: 1>} : vector<1x128xi32>
    %c-1640531535_i32 = arith.constant -1640531535 : i32
    %2 = vector.broadcast %c-1640531535_i32 : i32 to vector<1x128xi32>
    %3 = arith.muli %1, %2 : vector<1x128xi32>
    %c-2048144777_i32 = arith.constant -2048144777 : i32
    %4 = arith.muli %0, %c-2048144777_i32 : i32
    %5 = vector.broadcast %4 : i32 to vector<1x128xi32>
    %6 = arith.addi %3, %5 : vector<1x128xi32>
    %c-1028477379_i32 = arith.constant -1028477379 : i32
    %7 = arith.muli %arg0, %c-1028477379_i32 : i32
    %8 = vector.broadcast %7 : i32 to vector<1x128xi32>
    %9 = arith.addi %6, %8 : vector<1x128xi32>
    %c16_i32 = arith.constant 16 : i32
    %10 = vector.broadcast %c16_i32 : i32 to vector<1x128xi32>
    %11 = arith.shrui %9, %10 : vector<1x128xi32>
    %12 = arith.xori %9, %11 : vector<1x128xi32>
    %c2146121005_i32 = arith.constant 2146121005 : i32
    %13 = vector.broadcast %c2146121005_i32 : i32 to vector<1x128xi32>
    %14 = arith.muli %12, %13 : vector<1x128xi32>
    %c15_i32 = arith.constant 15 : i32
    %15 = vector.broadcast %c15_i32 : i32 to vector<1x128xi32>
    %16 = arith.shrui %14, %15 : vector<1x128xi32>
    %17 = arith.xori %14, %16 : vector<1x128xi32>
    %c-2073254261_i32 = arith.constant -2073254261 : i32
    %18 = vector.broadcast %c-2073254261_i32 : i32 to vector<1x128xi32>
    %19 = arith.muli %17, %18 : vector<1x128xi32>
    %c16_i32_0 = arith.constant 16 : i32
    %20 = vector.broadcast %c16_i32_0 : i32 to vector<1x128xi32>
    %21 = arith.shrui %19, %20 : vector<1x128xi32>
    %22 = arith.xori %19, %21 : vector<1x128xi32>
    %c-2147483648_i32 = arith.constant -2147483648 : i32
    %23 = vector.broadcast %c-2147483648_i32 : i32 to vector<1x128xi32>
    %24 = arith.cmpi ult, %22, %23 : vector<1x128xi32>
    %cst = arith.constant 2.000000e+00 : f32
    %cst_1 = arith.constant 0.000000e+00 : f32
    %25 = vector.broadcast %cst : f32 to vector<1x128xf32>
    %26 = vector.broadcast %cst_1 : f32 to vector<1x128xf32>
    %27 = arith.select %24, %25, %26 : vector<1x128xi1>, vector<1x128xf32>
    %c0_2 = arith.constant 0 : index
    %c0_3 = arith.constant 0 : index
    %c0_4 = arith.constant 0 : index
    %28 = vector.load %arg3[%c0_2, %c0_3, %c0_4] : memref<1x8x128xf32, #tpu.memory_space<vmem>>, vector<1x8x128xf32>
    %29 = vector.shape_cast %28 : vector<1x8x128xf32> to vector<8x128xf32>
    %30 = vector.broadcast %27 : vector<1x128xf32> to vector<8x128xf32>
    %31 = arith.mulf %29, %30 : vector<8x128xf32>
    %c0_5 = arith.constant 0 : index
    %c0_6 = arith.constant 0 : index
    %c0_7 = arith.constant 0 : index
    %32 = vector.load %arg4[%c0_5, %c0_6, %c0_7] : memref<1x8x128xf32, #tpu.memory_space<vmem>>, vector<1x8x128xf32>
    %33 = vector.shape_cast %32 : vector<1x8x128xf32> to vector<8x128xf32>
    %34 = vector.shape_cast %31 : vector<8x128xf32> to vector<1x8x128xf32>
    tpu.vector_store %arg4[%c0_5, %c0_6, %c0_7], %34 {strides = array<i32>} : memref<1x8x128xf32, #tpu.memory_space<vmem>>, vector<1x8x128xf32>,
    return
  }
  func.func @transform_0(%arg0: i32, %arg1: i32, %arg2: memref<1xi32, #tpu.memory_space<smem>>) -> (i32, i32, i32) {
    %c0_i32 = arith.constant 0 : i32
    %c0_i32_0 = arith.constant 0 : i32
    return %arg0, %arg1, %c0_i32 : i32, i32, i32
  }
  func.func @transform_1(%arg0: i32, %arg1: i32, %arg2: memref<1xi32, #tpu.memory_space<smem>>) -> (i32, i32, i32) {
    %c0_i32 = arith.constant 0 : i32
    %c0_i32_0 = arith.constant 0 : i32
    return %arg0, %arg1, %c0_i32 : i32, i32, i32
  }
}

</mosaic_0001>

<llo_original>
// kernel: tpu_custom_call.1
$region0: #{tpu_custom_call.1}
  #allocation0 [shape = 'u32[]', space=smem, size = 0x4, offset = 0x4, fixed_abs, tag = 'smem constant byte address 0x4 - core index']
  #allocation1 [shape = 'u32[72,128]{1,0:T(1,128)}', space=vmem, size = 0x9000, scoped, tag = 'internal scratch']
  #allocation2 [shape = 's32[1]{0}', space=sflag, size = 0x4, scoped, tag = 'scoped memory for tpu_custom_call.1']
  #allocation3 [shape = 's32[1]{0:T(128)S(6)}', space=smem, size = 0x200, scoped, tag = 'prefetched SMEM operand 0']
  %s0 = inlined_call_operand.<no memory space> [shape: s32[1], index: 0, kind: input, shape index: {}]
  %s1 = inlined_call_operand.hbm [shape: f32[2,8,128], index: 1, kind: input, shape index: {}]
  %s2 = inlined_call_operand.hbm [shape: f32[2,8,128], index: 2, kind: output, shape index: {}]
  %s3 = sld [smem:[#allocation0]]
  $region41: #{tpu_custom_call.1} parent=0
    _
  %s5 = ssub.s32 1, %s3
  %s6 = scalar_select 0, %s5, %s3
  %7 = sst [smem:[#allocation3]] %s0
  $region1: #{tpu_custom_call.1} parent=0
    #allocation4 [shape = 'u8[8192]{0}', space=vmem, size = 0x2000, scoped, tag = 'input window, operand 1']
    #allocation5 [shape = 's32[2]{0}', space=sflag, size = 0x8, scoped, tag = 'scoped memory for tpu_custom_call.1']
    #allocation6 [shape = 's32[2]{0}', space=sflag, size = 0x8, scoped, tag = 'scoped memory for tpu_custom_call.1']
    #allocation7 [shape = 'u8[8192]{0}', space=vmem, size = 0x2000, scoped, tag = 'output window, operand 0']
    %8 = vsyncpa [#allocation5], 0
    %s9 = scalar_lea.sflag [#allocation5], 1
    %10 = vsyncpa %s9, 0
    %11 = vsyncpa [#allocation6], 0
    %s12 = scalar_lea.sflag [#allocation6], 1
    %13 = vsyncpa %s12, 0
    loop: start=0, step=1, limit=4
    $region2: #{tpu_custom_call.1} parent=1 // loop_pre_header
      _
    $region3: #{tpu_custom_call.1} parent=1 // loop_header
      %s15 = sphi 0, %s19
      %p16 = scmp.ge.s32.totalorder %s15, 4
      %s22 = sphi 0, %s34
      %s23 = sphi 0, %s30
      %s24 = sphi 0, %s22
      %s25 = sphi 0, %s23
      %s26 = sphi 0, %s24
      %s27 = sphi 0, %s25
      %s39 = sphi 0, %s41
      %s42 = sphi 0, %s39
      %s43 = sphi 0, %s42
      %s59 = sphi 0, %s43
      %s67 = sphi 0, %s69
      %s70 = sphi 0, %s67
      %s71 = sphi 0, %s70
      %s87 = sphi 0, %s71
    $region4: #{tpu_custom_call.1} parent=1 // loop_header_branch
      %18 = sbr.rel (%p16) target = $region8
    $region5: #{tpu_custom_call.1} parent=1 // loop_body
      %s20 = ssub.s32 %s15, 1
      %s21 = ssub.s32 %s15, 2
      %s28 = sadd.s32 1, %s23
      %p29 = scmp.ge.s32.totalorder %s28, 1
      %s30 = scalar_select %p29, 0, %s28
      %s31 = sadd.s32 1, %s22
      %s32 = scalar_select %p29, %s31, %s22
      %p33 = scmp.ge.s32.totalorder %s32, 2
      %s34 = scalar_select %p33, 0, %s32
      %s35 = ssub.s32 %s22, %s34
      %s36 = ssub.s32 %s23, %s30
      %s37 = sor.u32 %s35, %s36
      %p38 = scmp.eq.s32.totalorder %s37, 0
      %s40 = sadd.s32 %s39, 1
      %s41 = scalar_select %p38, %s39, %s40
      %p44 = pneg %p38
      %p45 = scmp.eq.s32.totalorder %s15, 1
      %p46 = por %p44, %p45
      %p47 = scmp.ne.s32.totalorder %s39, %s42
      %p48 = scmp.eq.s32.totalorder %s15, 0
      %p49 = por %p47, %p48
      %p50 = scmp.ne.s32.totalorder %s39, %s42
      %p51 = scmp.eq.s32.totalorder %s20, 1
      %p52 = por %p50, %p51
      %p53 = scmp.ne.s32.totalorder %s42, %s43
      %p54 = scmp.eq.s32.totalorder %s20, 0
      %p55 = por %p53, %p54
      %p56 = scmp.ne.s32.totalorder %s42, %s43
      %p57 = scmp.eq.s32.totalorder %s21, 1
      %p58 = por %p56, %p57
      %p60 = scmp.ne.s32.totalorder %s43, %s59
      %p61 = scmp.eq.s32.totalorder %s21, 0
      %p62 = por %p60, %p61
      %s63 = ssub.s32 %s22, %s34
      %s64 = ssub.s32 %s23, %s30
      %s65 = sor.u32 %s63, %s64
      %p66 = scmp.eq.s32.totalorder %s65, 0
      %s68 = sadd.s32 %s67, 1
      %s69 = scalar_select %p66, %s67, %s68
      %p72 = pneg %p66
      %p73 = scmp.eq.s32.totalorder %s15, 1
      %p74 = por %p72, %p73
      %p75 = scmp.ne.s32.totalorder %s67, %s70
      %p76 = scmp.eq.s32.totalorder %s15, 0
      %p77 = por %p75, %p76
      %p78 = scmp.ne.s32.totalorder %s67, %s70
      %p79 = scmp.eq.s32.totalorder %s20, 1
      %p80 = por %p78, %p79
      %p81 = scmp.ne.s32.totalorder %s70, %s71
      %p82 = scmp.eq.s32.totalorder %s20, 0
      %p83 = por %p81, %p82
      %p84 = scmp.ne.s32.totalorder %s70, %s71
      %p85 = scmp.eq.s32.totalorder %s21, 1
      %p86 = por %p84, %p85
      %p88 = scmp.ne.s32.totalorder %s71, %s87
      %p89 = scmp.eq.s32.totalorder %s21, 0
      %p90 = por %p88, %p89
      %p91 = scmp.le.s32.totalorder 1, %s15
      %p92 = scmp.lt.s32.totalorder %s15, 3
      %p93 = pnand %p91, %p92
      %p94 = pneg %p93
      // Predicated region
      $region9: #{tpu_custom_call.1} parent=5 // pred_check
        _
      $region10: #{tpu_custom_call.1} parent=5 // pred_check_branch
        %96 = sbr.rel (%p93) target = $region12
      $region11: #{tpu_custom_call.1} parent=5 // pred_region
        %s97 = ssub.s32 %s15, 1
      $region12: #{tpu_custom_call.1} parent=5 // pred_fallthru
        _
      %p98 = scmp.lt.s32.totalorder %s15, 2
      // Predicated region
      $region13: #{tpu_custom_call.1} parent=5 // pred_check
        %p99 = pneg %p98
      $region14: #{tpu_custom_call.1} parent=5 // pred_check_branch
        %101 = sbr.rel (%p99) target = $region16
      $region15: #{tpu_custom_call.1} parent=5 // pred_region
        // Predicated region
        $region17: #{tpu_custom_call.1} parent=15 // pred_check
          %p102 = pneg %p49
        $region18: #{tpu_custom_call.1} parent=15 // pred_check_branch
          %104 = sbr.rel (%p102) target = $region20
        $region19: #{tpu_custom_call.1} parent=15 // pred_region
          %s105 = sand.u32 %s39, 1
          %s106 = scalar_lea.sflag [#allocation5], %s105
          %s107 = sand.u32 %s39, 1
          %s108 = smul.addr %s107, 8
          %s109 = scalar_lea.vmem [#allocation4], %s108
          %111 = vsyncadd %s106, 0
          %s112 = sadd.s32 %s23, %s22
          %s113 = smul.addr %s112, 8
          %s114 = scalar_lea.hbm %s1, %s113
          %s116 = sshll.u32 %s114, 4
          %s117 = int_to_ptr.hbm [resolvable:$true] %s116
          %s118 = sshll.u32 %s109, 4
          %s119 = int_to_ptr.vmem [resolvable:$true] %s118
          %121 = dma.hbm_to_vmem [thread:$0]  %s117, 128, %s119, %s106
        $region20: #{tpu_custom_call.1} parent=15 // pred_fallthru
          _
      $region16: #{tpu_custom_call.1} parent=5 // pred_fallthru
        _
      %p122 = scmp.le.s32.totalorder 1, %s15
      %p123 = scmp.lt.s32.totalorder %s15, 3
      %p124 = pnand %p122, %p123
      %p125 = pneg %p124
      // Predicated region
      $region21: #{tpu_custom_call.1} parent=5 // pred_check
        _
      $region22: #{tpu_custom_call.1} parent=5 // pred_check_branch
        %127 = sbr.rel (%p124) target = $region24
      $region23: #{tpu_custom_call.1} parent=5 // pred_region
        %s128 = ssub.s32 %s15, 1
        %s129 = sand.u32 %s42, 1
        %s130 = scalar_lea.sflag [#allocation5], %s129
        %s131 = sand.u32 %s42, 1
        %s132 = smul.addr %s131, 8
        %s133 = scalar_lea.vmem [#allocation4], %s132
        // Predicated region
        $region25: #{tpu_custom_call.1} parent=23 // pred_check
          %p134 = pneg %p55
        $region26: #{tpu_custom_call.1} parent=23 // pred_check_branch
          %136 = sbr.rel (%p134) target = $region28
        $region27: #{tpu_custom_call.1} parent=23 // pred_region
          %138 = dma.done %s130, 128
        $region28: #{tpu_custom_call.1} parent=23 // pred_fallthru
          _
        %s139 = sand.u32 %s42, 1
        %s140 = scalar_lea.sflag [#allocation5], %s139
        %s141 = sand.u32 %s42, 1
        %s142 = smul.addr %s141, 8
        %s143 = scalar_lea.vmem [#allocation4], %s142
        %p144 = pneg %p55
        %p145 = pneg %p52
        %p146 = pneg %p83
        %p147 = pneg %p80
        %s148 = sand.u32 %s70, 1
        %s149 = scalar_lea.sflag [#allocation6], %s148
        %s150 = sand.u32 %s70, 1
        %s151 = smul.addr %s150, 8
        %s152 = scalar_lea.vmem [#allocation7], %s151
        %s153 = sld [smem:[#allocation3]]
        %v154 = vlaneseq
        %v155 = vand.u32 %v154, 127
        %v156 = vmul.u32 %v155, 2654435761
        %s157 = smul.u32 %s153, 2246822519
        %v158 = vstv %s157
        %v159 = vadd.s32 %v156, %v158
        %s160 = smul.u32 %s24, 3266489917
        %v161 = vstv %s160
        %v162 = vadd.s32 %v159, %v161
        %v163 = vshrl.u32 %v162, 16
        %v164 = vxor.u32 %v162, %v163
        %v165 = vmul.u32 %v164, 2146121005
        %v166 = vshrl.u32 %v165, 15
        %v167 = vxor.u32 %v165, %v166
        %v168 = vmul.u32 %v167, 2221713035
        %v169 = vshrl.u32 %v168, 16
        %v170 = vxor.u32 %v168, %v169
        %v171 = vadd.s32 %v170, 2147483648
        %vm173 = vcmp.lt.s32.totalorder %v171, 0
        %v174 = vsel %vm173, 2.0, 0.0
        %v175 = vld [vmem:[%s133] sm:$0xff]
        %v176 = vmul.f32 %v175, %v174
        %177 = vst [vmem:[%s152] sm:$0xff] %v176
        %s178 = sand.u32 %s70, 1
        %s179 = scalar_lea.sflag [#allocation6], %s178
        %s180 = sand.u32 %s70, 1
        %s181 = smul.addr %s180, 8
        %s182 = scalar_lea.vmem [#allocation7], %s181
        // Predicated region
        $region29: #{tpu_custom_call.1} parent=23 // pred_check
          %p183 = pneg %p80
        $region30: #{tpu_custom_call.1} parent=23 // pred_check_branch
          %185 = sbr.rel (%p183) target = $region32
        $region31: #{tpu_custom_call.1} parent=23 // pred_region
          %187 = vsyncadd %s179, 0
          %s188 = sadd.s32 %s25, %s24
          %s189 = smul.addr %s188, 8
          %s190 = scalar_lea.hbm %s2, %s189
          %s192 = sshll.u32 %s182, 4
          %s193 = int_to_ptr.vmem [resolvable:$true] %s192
          %s194 = sshll.u32 %s190, 4
          %s195 = int_to_ptr.hbm [resolvable:$true] %s194
          %197 = dma.vmem_to_hbm [thread:$0]  %s193, 128, %s195, %s179
        $region32: #{tpu_custom_call.1} parent=23 // pred_fallthru
          _
      $region24: #{tpu_custom_call.1} parent=5 // pred_fallthru
        _
      %p198 = scmp.le.s32.totalorder 2, %s15
      // Predicated region
      $region33: #{tpu_custom_call.1} parent=5 // pred_check
        %p199 = pneg %p198
      $region34: #{tpu_custom_call.1} parent=5 // pred_check_branch
        %201 = sbr.rel (%p199) target = $region36
      $region35: #{tpu_custom_call.1} parent=5 // pred_region
        %s202 = ssub.s32 %s15, 2
        // Predicated region
        $region37: #{tpu_custom_call.1} parent=35 // pred_check
          %p203 = pneg %p86
        $region38: #{tpu_custom_call.1} parent=35 // pred_check_branch
          %205 = sbr.rel (%p203) target = $region40
        $region39: #{tpu_custom_call.1} parent=35 // pred_region
          %s206 = sand.u32 %s71, 1
          %s207 = scalar_lea.sflag [#allocation6], %s206
          %s208 = sand.u32 %s71, 1
          %s209 = smul.addr %s208, 8
          %s210 = scalar_lea.vmem [#allocation7], %s209
          %212 = dma.done %s207, 128
        $region40: #{tpu_custom_call.1} parent=35 // pred_fallthru
          _
      $region36: #{tpu_custom_call.1} parent=5 // pred_fallthru
        _
    $region6: #{tpu_custom_call.1} parent=1 // loop_footer
      %s19 = sadd.s32 1, %s15
    $region7: #{tpu_custom_call.1} parent=1 // loop_footer_branch
      %14 = sbr.rel target = $region3
    $region8: #{tpu_custom_call.1} parent=1 // loop_exit
      _
    %213 = vsyncpa [#allocation5], 1
    %s214 = scalar_lea.sflag [#allocation5], 1
    %215 = vsyncpa %s214, 1
    %216 = vsyncpa [#allocation6], 1
    %s217 = scalar_lea.sflag [#allocation6], 1
    %218 = vsyncpa %s217, 1

</llo_original>
